<compile_context>
chip_gen: v7x
topology: tpu7x:2x2x1
jax: 0.10.0
libtpu: 0.0.40
codegen_flags: <defaults>
</compile_context>

<pallas_src>
import functools

import jax
import jax.numpy as jnp
from jax.experimental import pallas as pl
from jax.experimental.pallas import tpu as pltpu


def _round_up(x: int, m: int) -> int:
    return (x + m - 1) // m * m


def _pick_tile(dim: int, unit: int, cap: int) -> int:
    """Tile size for one axis.

    If the whole axis fits under `cap`, use the full dim (block == full array
    dim is always a legal TPU block -> zero padding / zero waste).  Otherwise
    search multiples of `unit` <= cap minimizing ragged-edge waste, preferring
    larger tiles on ties (fewer grid steps, denser stores).
    """
    cap = max(unit, int(cap))
    if dim <= cap:
        return dim
    cap = (cap // unit) * unit
    best_t, best_waste = unit, None
    t = cap
    while t >= unit:
        waste = (-dim) % t
        if best_waste is None or waste < best_waste:
            best_t, best_waste = t, waste
        t -= unit
    return best_t


def _split_if_single_tile(M: int, N: int, tm: int, tn: int):
    """v7x shards 'parallel' grid axes over 2 TensorCores; make sure a
    non-trivial problem produces at least two parallel blocks."""
    if pl.cdiv(M, tm) * pl.cdiv(N, tn) > 1:
        return tm, tn
    if N >= 256:
        tn = _round_up(pl.cdiv(N, 2), 128)
    elif M >= 16:
        tm = _round_up(pl.cdiv(M, 2), 8)
    return tm, tn


def _vmem_budget():
    """(double-buffered working-set budget, vmem_limit_bytes), per chip gen."""
    phys = 64 * 1024 * 1024  # conservative fallback (v7x: 64 MiB per TC)
    try:
        info = pltpu.get_tpu_info()
        phys = int(getattr(info, "vmem_capacity_bytes", phys)) or phys
    except Exception:
        pass
    budget = min(phys // 2, 48 << 20)          # v7x: 32 MiB, v5e/v6e: 48 MiB
    limit = min(phys * 3 // 4, budget + (16 << 20))
    return budget, int(limit)


# ------------------------------ kernels ------------------------------------


def _full_k_kernel(a_ref, b_ref, o_ref, *, compute_dtype):
    # Whole K resident in VMEM: single MXU pass per (i, j) tile, no scratch.
    a = a_ref[...]
    b = b_ref[...]
    if compute_dtype is not None:
        a = a.astype(compute_dtype)
        b = b.astype(compute_dtype)
    o_ref[...] = jnp.dot(a, b, preferred_element_type=jnp.float32).astype(o_ref.dtype)


def _k_tiled_accum_out_kernel(a_ref, b_ref, o_ref, *, compute_dtype):
    # f32 output: the output block is resident across the k axis, so
    # accumulate directly into it (no acc scratch, no final copy).
    @pl.when(pl.program_id(2) == 0)
    def _():
        o_ref[...] = jnp.zeros_like(o_ref)

    a = a_ref[...]
    b = b_ref[...]
    if compute_dtype is not None:
        a = a.astype(compute_dtype)
        b = b.astype(compute_dtype)
    o_ref[...] += jnp.dot(a, b, preferred_element_type=jnp.float32)


def _k_tiled_scratch_kernel(a_ref, b_ref, o_ref, acc_ref, *, compute_dtype):
    # Narrow output dtype: keep the f32 accumulator scratch.
    @pl.when(pl.program_id(2) == 0)
    def _():
        acc_ref[...] = jnp.zeros_like(acc_ref)

    a = a_ref[...]
    b = b_ref[...]
    if compute_dtype is not None:
        a = a.astype(compute_dtype)
        b = b.astype(compute_dtype)
    acc_ref[...] += jnp.dot(a, b, preferred_element_type=jnp.float32)

    @pl.when(pl.program_id(2) == pl.num_programs(2) - 1)
    def _():
        o_ref[...] = acc_ref[...].astype(o_ref.dtype)


# ------------------------------ wrapper -------------------------------------


def mf_forward(cfs: jax.Array, cmps: jax.Array, *,
               max_full_k: int = 4096, tk: int = 512,
               compute_dtype=None, vmem_limit_bytes: int | None = None,
               allow_fallback: bool = True) -> jax.Array:
    """Pallas-TPU implementation of MF.forward(): cfs @ cmps."""
    M, K = cfs.shape
    K2, N = cmps.shape
    assert K == K2, "inner dims must match"
    out_dtype = jnp.result_type(cfs.dtype, cmps.dtype)

    # Tiny problems: a single-tile pallas_call is pure launch/DMA overhead.
    if allow_fallback and (M * N * K) <= (1 << 18):
        return jnp.dot(cfs, cmps).astype(out_dtype)

    budget, default_limit = _vmem_budget()
    if vmem_limit_bytes is None:
        vmem_limit_bytes = default_limit

    isz = cfs.dtype.itemsize                 # input tiles stay in input dtype
    osz = jnp.dtype(out_dtype).itemsize

    # Advisory cost estimate (unpadded problem size).
    cost = pl.CostEstimate(
        flops=2 * M * N * K,
        transcendentals=0,
        bytes_accessed=(cfs.dtype.itemsize * M * K
                        + cmps.dtype.itemsize * K * N
                        + osz * M * N),
    )

    # Decide full-K (no reduction grid axis) vs K-tiled accumulation.
    full_k = K <= max_full_k
    tm_cap_b = 0
    if full_k:
        rem_m = budget // 2 - K * 128 * isz
        tm_cap_b = rem_m // (K * isz + 128 * osz) if rem_m > 0 else 0
        if tm_cap_b < 8:
            full_k = False

    if full_k:
        # ---- 2-D grid: one full-K MXU pass per output tile, no padding. ----
        tm = _pick_tile(M, 8, min(512, (tm_cap_b // 8) * 8))
        rem_n = budget // 2 - tm * K * isz
        tn_cap_b = rem_n // (K * isz + tm * osz) if rem_n > 0 else 128
        tn = _pick_tile(N, 128, max(128, min(2048, (tn_cap_b // 128) * 128)))
        tm, tn = _split_if_single_tile(M, N, tm, tn)
        grid = (pl.cdiv(M, tm), pl.cdiv(N, tn))

        kernel = functools.partial(_full_k_kernel, compute_dtype=compute_dtype)
        grid_spec = pltpu.PrefetchScalarGridSpec(
            num_scalar_prefetch=0,
            grid=grid,
            in_specs=[
                pl.BlockSpec((tm, K), lambda i, j: (i, 0)),
                pl.BlockSpec((K, tn), lambda i, j: (0, j)),
            ],
            out_specs=pl.BlockSpec((tm, tn), lambda i, j: (i, j)),
        )
        dim_sem = ("parallel", "parallel")
    else:
        # ---- 3-D grid: K streamed over the last ("arbitrary") axis. --------
        tk = max(128, min(int(tk), 1024))
        kp = _round_up(K, tk)
        # Only K needs zero padding for correctness (a garbage K tail would
        # pollute every output element); ragged M/N edges are masked by Pallas.
        if kp != K:
            cfs = jnp.pad(cfs, ((0, 0), (0, kp - K)))
            cmps = jnp.pad(cmps, ((0, kp - K), (0, 0)))

        tm = _pick_tile(M, 8, 512)
        tn = _pick_tile(N, 128, 1024)
        tm, tn = _split_if_single_tile(M, N, tm, tn)
        grid = (pl.cdiv(M, tm), pl.cdiv(N, tn), kp // tk)

        if out_dtype == jnp.float32:
            kernel = functools.partial(_k_tiled_accum_out_kernel,
                                       compute_dtype=compute_dtype)
            scratch_shapes = ()
        else:
            kernel = functools.partial(_k_tiled_scratch_kernel,
                                       compute_dtype=compute_dtype)
            scratch_shapes = [pltpu.VMEM((tm, tn), jnp.float32)]

        grid_spec = pltpu.PrefetchScalarGridSpec(
            num_scalar_prefetch=0,
            grid=grid,
            in_specs=[
                pl.BlockSpec((tm, tk), lambda i, j, k: (i, k)),
                pl.BlockSpec((tk, tn), lambda i, j, k: (k, j)),
            ],
            out_specs=pl.BlockSpec((tm, tn), lambda i, j, k: (i, j)),
            scratch_shapes=scratch_shapes,
        )
        dim_sem = ("parallel", "parallel", "arbitrary")

    return pl.pallas_call(
        kernel,
        out_shape=jax.ShapeDtypeStruct((M, N), out_dtype),
        grid_spec=grid_spec,
        compiler_params=pltpu.CompilerParams(
            dimension_semantics=dim_sem,
            vmem_limit_bytes=int(vmem_limit_bytes),
        ),
        cost_estimate=cost,
    )(cfs, cmps)


if __name__ == "__main__":
    # Shapes consistent with MF(n_coeffs, n_comps, n_pix); small by design.
    n_coeffs, n_comps, n_pix = 16, 32, 128

    key = jax.random.PRNGKey(0)
    k_cfs, k_cmps = jax.random.split(key)
    cfs = jax.random.uniform(k_cfs, (n_coeffs, n_comps), dtype=jnp.float32)
    cmps = jax.random.uniform(k_cmps, (n_comps, n_pix), dtype=jnp.float32)

    ref = jnp.matmul(cfs, cmps, precision=jax.lax.Precision.HIGHEST)

    # Default MF-sized call (tiny-problem fallback path).
    out = jax.block_until_ready(mf_forward(cfs, cmps))
    assert out.shape == (n_coeffs, n_pix)
    assert jnp.allclose(out, ref, atol=1e-5, rtol=1e-5)

    # Force the Pallas kernel on the same MF-sized problem.
    out_p = jax.block_until_ready(mf_forward(cfs, cmps, allow_fallback=False))
    assert out_p.shape == (n_coeffs, n_pix)
    assert jnp.allclose(out_p, ref, atol=1e-4, rtol=1e-4)

    def _check(M, K, N, tol=1e-2, **kw):
        ka, kb = jax.random.split(jax.random.PRNGKey(M * 7 + K * 3 + N))
        a = jax.random.uniform(ka, (M, K), dtype=jnp.float32)
        b = jax.random.uniform(kb, (K, N), dtype=jnp.float32)
        got = jax.block_until_ready(mf_forward(a, b, **kw))
        want = jnp.matmul(a, b, precision=jax.lax.Precision.HIGHEST)
        assert got.shape == (M, N)
        rel = float(jnp.max(jnp.abs(got - want)) / jnp.max(jnp.abs(want)))
        assert rel < tol, (M, K, N, rel)

    _check(200, 48, 1000)     # MF regime: small K, ragged M/N, no wrapper pad
    _check(64, 4096, 512)     # large K now kept on the full-K fast path
    _check(96, 8200, 384)     # K-tiled accumulate-into-output path, K padded
    _check(200, 48, 1000, tol=5e-2, compute_dtype=jnp.bfloat16)  # opt-in bf16 MXU

    print("KERNEL_OK")
</pallas_src>

<mosaic_0001>
module attributes {stable_mosaic.version = 11 : i64} {
  func.func @_full_k_kernel(%arg0: i32, %arg1: i32, %arg2: memref<8x32xf32, #tpu.memory_space<vmem>>, %arg3: memref<32x128xf32, #tpu.memory_space<vmem>>, %arg4: memref<8x128xf32, #tpu.memory_space<vmem>>) attributes {dimension_semantics = [#tpu.dimension_semantics<parallel>, #tpu.dimension_semantics<parallel>], iteration_bounds = array<i64: 2, 1>, scalar_prefetch = 0 : i64, scratch_operands = 0 : i64, tpu.core_type = #tpu.core_type<tc>, window_params = [{transform_indices = @transform_0, window_bounds = array<i64: 8, 32>}, {transform_indices = @transform_1, window_bounds = array<i64: 32, 128>}, {transform_indices = @transform_2, window_bounds = array<i64: 8, 128>}]} {
    %c0 = arith.constant 0 : index
    %c0_0 = arith.constant 0 : index
    %0 = vector.load %arg2[%c0, %c0_0] : memref<8x32xf32, #tpu.memory_space<vmem>>, vector<8x32xf32>
    %c0_1 = arith.constant 0 : index
    %c0_2 = arith.constant 0 : index
    %1 = vector.load %arg3[%c0_1, %c0_2] : memref<32x128xf32, #tpu.memory_space<vmem>>, vector<32x128xf32>
    %cst = arith.constant dense<0.000000e+00> : vector<8x128xf32>
    %2 = tpu.matmul %0, %1, %cst {dimension_numbers = #tpu.dot_dimension_numbers<[1], [0], [0], [1], [0, 0, 1, 1], [], []>} : vector<8x32xf32>, vector<32x128xf32>, vector<8x128xf32> -> vector<8x128xf32>
    %c0_3 = arith.constant 0 : index
    %c0_4 = arith.constant 0 : index
    %3 = vector.load %arg4[%c0_3, %c0_4] : memref<8x128xf32, #tpu.memory_space<vmem>>, vector<8x128xf32>
    tpu.vector_store %arg4[%c0_3, %c0_4], %2 {strides = array<i32>} : memref<8x128xf32, #tpu.memory_space<vmem>>, vector<8x128xf32>,
    return
  }
  func.func @transform_0(%arg0: i32, %arg1: i32) -> (i32, i32) {
    %c0_i32 = arith.constant 0 : i32
    %c0_i32_0 = arith.constant 0 : i32
    return %arg0, %c0_i32 : i32, i32
  }
  func.func @transform_1(%arg0: i32, %arg1: i32) -> (i32, i32) {
    %c0_i32 = arith.constant 0 : i32
    %c0_i32_0 = arith.constant 0 : i32
    return %c0_i32, %arg1 : i32, i32
  }
  func.func @transform_2(%arg0: i32, %arg1: i32) -> (i32, i32) {
    %c0_i32 = arith.constant 0 : i32
    return %arg0, %arg1 : i32, i32
  }
}

</mosaic_0001>

<llo_original>
// kernel: tpu_custom_call.1
$region0: #{tpu_custom_call.1}
  #allocation0 [shape = 'u32[]', space=smem, size = 0x4, offset = 0x4, fixed_abs, tag = 'smem constant byte address 0x4 - core index']
  #allocation1 [shape = 'u32[144,128]{1,0:T(1,128)}', space=vmem, size = 0x12000, scoped, tag = 'internal scratch']
  %s0 = inlined_call_operand.hbm [shape: f32[16,32], index: 0, kind: input, shape index: {}]
  %s1 = inlined_call_operand.hbm [shape: f32[32,128], index: 1, kind: input, shape index: {}]
  %s2 = inlined_call_operand.hbm [shape: f32[16,128], index: 2, kind: output, shape index: {}]
  %s3 = sld [smem:[#allocation0]]
  $region49: #{tpu_custom_call.1} parent=0
    _
  %s5 = ssub.s32 1, %s3
  %s6 = scalar_select 0, %s5, %s3
  $region1: #{tpu_custom_call.1} parent=0
    #allocation2 [shape = 'u8[8192]{0}', space=vmem, size = 0x2000, scoped, tag = 'input window, operand 0']
    #allocation3 [shape = 's32[2]{0}', space=sflag, size = 0x8, scoped, tag = 'scoped memory for tpu_custom_call.1']
    #allocation4 [shape = 's32[2]{0}', space=sflag, size = 0x8, scoped, tag = 'scoped memory for tpu_custom_call.1']
    #allocation5 [shape = 'u8[16384]{0}', space=vmem, size = 0x4000, scoped, tag = 'input window, operand 1, single buffered']
    #allocation6 [shape = 's32[1]{0}', space=sflag, size = 0x4, scoped, tag = 'scoped memory for tpu_custom_call.1']
    #allocation7 [shape = 'u8[8192]{0}', space=vmem, size = 0x2000, scoped, tag = 'output window, operand 0']
    %7 = vsyncpa [#allocation3], 0
    %s8 = scalar_lea.sflag [#allocation3], 1
    %9 = vsyncpa %s8, 0
    %10 = vsyncpa [#allocation6], 0
    %11 = vsyncpa [#allocation4], 0
    %s12 = scalar_lea.sflag [#allocation4], 1
    %13 = vsyncpa %s12, 0
    loop: start=0, step=1, limit=4
    $region2: #{tpu_custom_call.1} parent=1 // loop_pre_header
      _
    $region3: #{tpu_custom_call.1} parent=1 // loop_header
      %s15 = sphi 0, %s19
      %p16 = scmp.ge.s32.totalorder %s15, 4
      %s22 = sphi 0, %s34
      %s23 = sphi 0, %s30
      %s24 = sphi 0, %s22
      %s25 = sphi 0, %s23
      %s26 = sphi 0, %s24
      %s27 = sphi 0, %s25
      %s37 = sphi 0, %s39
      %s40 = sphi 0, %s37
      %s41 = sphi 0, %s40
      %s57 = sphi 0, %s41
      %s63 = sphi 0, %s65
      %s66 = sphi 0, %s63
      %s67 = sphi 0, %s66
      %s83 = sphi 0, %s67
      %s91 = sphi 0, %s93
      %s94 = sphi 0, %s91
      %s95 = sphi 0, %s94
      %s111 = sphi 0, %s95
    $region4: #{tpu_custom_call.1} parent=1 // loop_header_branch
      %18 = sbr.rel (%p16) target = $region8
    $region5: #{tpu_custom_call.1} parent=1 // loop_body
      %s20 = ssub.s32 %s15, 1
      %s21 = ssub.s32 %s15, 2
      %s28 = sadd.s32 1, %s23
      %p29 = scmp.ge.s32.totalorder %s28, 1
      %s30 = scalar_select %p29, 0, %s28
      %s31 = sadd.s32 1, %s22
      %s32 = scalar_select %p29, %s31, %s22
      %p33 = scmp.ge.s32.totalorder %s32, 2
      %s34 = scalar_select %p33, 0, %s32
      %s35 = ssub.s32 %s22, %s34
      %p36 = scmp.eq.s32.totalorder %s35, 0
      %s38 = sadd.s32 %s37, 1
      %s39 = scalar_select %p36, %s37, %s38
      %p42 = pneg %p36
      %p43 = scmp.eq.s32.totalorder %s15, 1
      %p44 = por %p42, %p43
      %p45 = scmp.ne.s32.totalorder %s37, %s40
      %p46 = scmp.eq.s32.totalorder %s15, 0
      %p47 = por %p45, %p46
      %p48 = scmp.ne.s32.totalorder %s37, %s40
      %p49 = scmp.eq.s32.totalorder %s20, 1
      %p50 = por %p48, %p49
      %p51 = scmp.ne.s32.totalorder %s40, %s41
      %p52 = scmp.eq.s32.totalorder %s20, 0
      %p53 = por %p51, %p52
      %p54 = scmp.ne.s32.totalorder %s40, %s41
      %p55 = scmp.eq.s32.totalorder %s21, 1
      %p56 = por %p54, %p55
      %p58 = scmp.ne.s32.totalorder %s41, %s57
      %p59 = scmp.eq.s32.totalorder %s21, 0
      %p60 = por %p58, %p59
      %s61 = ssub.s32 %s23, %s30
      %p62 = scmp.eq.s32.totalorder %s61, 0
      %s64 = sadd.s32 %s63, 1
      %s65 = scalar_select %p62, %s63, %s64
      %p68 = pneg %p62
      %p69 = scmp.eq.s32.totalorder %s15, 1
      %p70 = por %p68, %p69
      %p71 = scmp.ne.s32.totalorder %s63, %s66
      %p72 = scmp.eq.s32.totalorder %s15, 0
      %p73 = por %p71, %p72
      %p74 = scmp.ne.s32.totalorder %s63, %s66
      %p75 = scmp.eq.s32.totalorder %s20, 1
      %p76 = por %p74, %p75
      %p77 = scmp.ne.s32.totalorder %s66, %s67
      %p78 = scmp.eq.s32.totalorder %s20, 0
      %p79 = por %p77, %p78
      %p80 = scmp.ne.s32.totalorder %s66, %s67
      %p81 = scmp.eq.s32.totalorder %s21, 1
      %p82 = por %p80, %p81
      %p84 = scmp.ne.s32.totalorder %s67, %s83
      %p85 = scmp.eq.s32.totalorder %s21, 0
      %p86 = por %p84, %p85
      %s87 = ssub.s32 %s22, %s34
      %s88 = ssub.s32 %s23, %s30
      %s89 = sor.u32 %s87, %s88
      %p90 = scmp.eq.s32.totalorder %s89, 0
      %s92 = sadd.s32 %s91, 1
      %s93 = scalar_select %p90, %s91, %s92
      %p96 = pneg %p90
      %p97 = scmp.eq.s32.totalorder %s15, 1
      %p98 = por %p96, %p97
      %p99 = scmp.ne.s32.totalorder %s91, %s94
      %p100 = scmp.eq.s32.totalorder %s15, 0
      %p101 = por %p99, %p100
      %p102 = scmp.ne.s32.totalorder %s91, %s94
      %p103 = scmp.eq.s32.totalorder %s20, 1
      %p104 = por %p102, %p103
      %p105 = scmp.ne.s32.totalorder %s94, %s95
      %p106 = scmp.eq.s32.totalorder %s20, 0
      %p107 = por %p105, %p106
      %p108 = scmp.ne.s32.totalorder %s94, %s95
      %p109 = scmp.eq.s32.totalorder %s21, 1
      %p110 = por %p108, %p109
      %p112 = scmp.ne.s32.totalorder %s95, %s111
      %p113 = scmp.eq.s32.totalorder %s21, 0
      %p114 = por %p112, %p113
      %p115 = scmp.le.s32.totalorder 1, %s15
      %p116 = scmp.lt.s32.totalorder %s15, 3
      %p117 = pnand %p115, %p116
      %p118 = pneg %p117
      // Predicated region
      $region9: #{tpu_custom_call.1} parent=5 // pred_check
        _
      $region10: #{tpu_custom_call.1} parent=5 // pred_check_branch
        %120 = sbr.rel (%p117) target = $region12
      $region11: #{tpu_custom_call.1} parent=5 // pred_region
        %s121 = ssub.s32 %s15, 1
        // Predicated region
        $region13: #{tpu_custom_call.1} parent=11 // pred_check
          %p122 = pneg %p79
        $region14: #{tpu_custom_call.1} parent=11 // pred_check_branch
          %124 = sbr.rel (%p122) target = $region16
        $region15: #{tpu_custom_call.1} parent=11 // pred_region
          %s126 = ssub.s32 512, 512
          %127 = vsyncadd [#allocation6], %s126
          %s128 = smul.addr %s25, 128
          %s129 = scalar_lea.hbm %s1, %s128
          %s130 = sshll.u32 [#allocation5], 4
          %s131 = int_to_ptr.vmem [resolvable:$true] %s130
          %136 = dma.hbm_to_vmem [thread:$0]  %s129, 512, %s131, [#allocation6], 128, 128, 8
        $region16: #{tpu_custom_call.1} parent=11 // pred_fallthru
          _
      $region12: #{tpu_custom_call.1} parent=5 // pred_fallthru
        _
      %p137 = scmp.lt.s32.totalorder %s15, 2
      // Predicated region
      $region17: #{tpu_custom_call.1} parent=5 // pred_check
        %p138 = pneg %p137
      $region18: #{tpu_custom_call.1} parent=5 // pred_check_branch
        %140 = sbr.rel (%p138) target = $region20
      $region19: #{tpu_custom_call.1} parent=5 // pred_region
        // Predicated region
        $region21: #{tpu_custom_call.1} parent=19 // pred_check
          %p141 = pneg %p47
        $region22: #{tpu_custom_call.1} parent=19 // pred_check_branch
          %143 = sbr.rel (%p141) target = $region24
        $region23: #{tpu_custom_call.1} parent=19 // pred_region
          %s144 = sand.u32 %s37, 1
          %s145 = scalar_lea.sflag [#allocation3], %s144
          %s146 = sand.u32 %s37, 1
          %s147 = smul.addr %s146, 8
          %s148 = scalar_lea.vmem [#allocation2], %s147
          %s150 = ssub.s32 128, 128
          %151 = vsyncadd %s145, %s150
          %s152 = smul.addr %s22, 128
          %s153 = scalar_lea.hbm %s0, %s152
          %s155 = sshll.u32 %s148, 4
          %s156 = int_to_ptr.vmem [resolvable:$true] %s155
          %158 = dma.hbm_to_vmem [thread:$0]  %s153, 128, %s156, %s145
        $region24: #{tpu_custom_call.1} parent=19 // pred_fallthru
          _
      $region20: #{tpu_custom_call.1} parent=5 // pred_fallthru
        _
      %p159 = scmp.le.s32.totalorder 1, %s15
      %p160 = scmp.lt.s32.totalorder %s15, 3
      %p161 = pnand %p159, %p160
      %p162 = pneg %p161
      // Predicated region
      $region25: #{tpu_custom_call.1} parent=5 // pred_check
        _
      $region26: #{tpu_custom_call.1} parent=5 // pred_check_branch
        %164 = sbr.rel (%p161) target = $region28
      $region27: #{tpu_custom_call.1} parent=5 // pred_region
        %s165 = ssub.s32 %s15, 1
        %s166 = sand.u32 %s40, 1
        %s167 = scalar_lea.sflag [#allocation3], %s166
        %s168 = sand.u32 %s40, 1
        %s169 = smul.addr %s168, 8
        %s170 = scalar_lea.vmem [#allocation2], %s169
        // Predicated region
        $region29: #{tpu_custom_call.1} parent=27 // pred_check
          %p171 = pneg %p53
        $region30: #{tpu_custom_call.1} parent=27 // pred_check_branch
          %173 = sbr.rel (%p171) target = $region32
        $region31: #{tpu_custom_call.1} parent=27 // pred_region
          %174 = dma.done %s167, 128
        $region32: #{tpu_custom_call.1} parent=27 // pred_fallthru
          _
        // Predicated region
        $region33: #{tpu_custom_call.1} parent=27 // pred_check
          %p175 = pneg %p79
        $region34: #{tpu_custom_call.1} parent=27 // pred_check_branch
          %177 = sbr.rel (%p175) target = $region36
        $region35: #{tpu_custom_call.1} parent=27 // pred_region
          %178 = dma.done [#allocation6], 512
        $region36: #{tpu_custom_call.1} parent=27 // pred_fallthru
          _
        %s179 = sand.u32 %s40, 1
        %s180 = scalar_lea.sflag [#allocation3], %s179
        %s181 = sand.u32 %s40, 1
        %s182 = smul.addr %s181, 8
        %s183 = scalar_lea.vmem [#allocation2], %s182
        %p184 = pneg %p53
        %p185 = pneg %p50
        %p186 = pneg %p79
        %p187 = pneg %p76
        %p188 = pneg %p107
        %p189 = pneg %p104
        %s190 = sand.u32 %s94, 1
        %s191 = scalar_lea.sflag [#allocation4], %s190
        %s192 = sand.u32 %s94, 1
        %s193 = smul.addr %s192, 8
        %s194 = scalar_lea.vmem [#allocation7], %s193
        %v195 = vld [vmem:[%s170] sm:$0xff]
        %v196 = vld [vmem:[#allocation5] sm:$0xff]
        %v197 = vld [vmem:[#allocation5 + $0x8] sm:$0xff]
        %v198 = vld [vmem:[#allocation5 + $0x10] sm:$0xff]
        %v199 = vld [vmem:[#allocation5 + $0x18] sm:$0xff]
        %vm200 = vcmask 261120
        %v202 = vsel %vm200, %v195, 0
        %204 = vmatprep.subr.mxu0 0.0
        %205 = vmatpush1.msra.mxu0 %v196
        %206 = vmatprep.subr.mxu0 0.0
        %207 = vmatpush1.msra.mxu0 %v197
        %208 = vmatprep.subr.mxu0 0.0
        %209 = vmatpush1.msra.mxu0 %v198
        %210 = vmatprep.subr.mxu0 0.0
        %211 = vmatpush1.msra.mxu0 %v199
        %212 = vmatprep.subr.mxu0 0.0
        %213 = vmatpush1.msra.mxu0 0.0
        %214 = vmatprep.subr.mxu0 0.0
        %215 = vmatpush1.msra.mxu0 0.0
        %216 = vmatprep.subr.mxu0 0.0
        %217 = vmatpush1.msra.mxu0 0.0
        %218 = vmatprep.subr.mxu0 0.0
        %219 = vmatpush1.msra.mxu0 0.0
        %220 = vmatprep.subr.mxu0 0.0
        %221 = vmatpush1.msra.mxu0 0.0
        %222 = vmatprep.subr.mxu0 0.0
        %223 = vmatpush1.msra.mxu0 0.0
        %224 = vmatprep.subr.mxu0 0.0
        %225 = vmatpush1.msra.mxu0 0.0
        %226 = vmatprep.subr.mxu0 0.0
        %227 = vmatpush1.msra.mxu0 0.0
        %228 = vmatprep.subr.mxu0 0.0
        %229 = vmatpush1.msra.mxu0 0.0
        %230 = vmatprep.subr.mxu0 0.0
        %231 = vmatpush1.msra.mxu0 0.0
        %232 = vmatprep.subr.mxu0 0.0
        %233 = vmatpush1.msra.mxu0 0.0
        %234 = vmatprep.subr.mxu0 0.0
        %235 = vmatpush1.msra.mxu0 0.0
        %236 = vmatprep.subr.mxu0 0.0
        %237 = vmatpush1.msra.mxu0 0.0
        %238 = vmatprep.subr.mxu0 0.0
        %239 = vmatpush1.msra.mxu0 0.0
        %240 = vmatprep.subr.mxu0 0.0
        %241 = vmatpush1.msra.mxu0 0.0
        %242 = vmatprep.subr.mxu0 0.0
        %243 = vmatpush1.msra.mxu0 0.0
        %244 = vmatprep.subr.mxu0 0.0
        %245 = vmatpush1.msra.mxu0 0.0
        %246 = vmatprep.subr.mxu0 0.0
        %247 = vmatpush1.msra.mxu0 0.0
        %248 = vmatprep.subr.mxu0 0.0
        %249 = vmatpush1.msra.mxu0 0.0
        %250 = vmatprep.subr.mxu0 0.0
        %251 = vmatpush1.msra.mxu0 0.0
        %252 = vmatprep.subr.mxu0 0.0
        %253 = vmatpush1.msra.mxu0 0.0
        %254 = vmatprep.subr.mxu0 0.0
        %255 = vmatpush1.msra.mxu0 0.0
        %256 = vmatprep.subr.mxu0 0.0
        %257 = vmatpush1.msra.mxu0 0.0
        %258 = vmatprep.subr.mxu0 0.0
        %259 = vmatpush1.msra.mxu0 0.0
        %260 = vmatprep.subr.mxu0 0.0
        %261 = vmatpush1.msra.mxu0 0.0
        %262 = vmatprep.subr.mxu0 0.0
        %263 = vmatpush1.msra.mxu0 0.0
        %264 = vmatprep.subr.mxu0 0.0
        %265 = vmatpush1.msra.mxu0 0.0
        %266 = vmatprep.subr.mxu0 0.0
        %267 = vmatpush1.msra.mxu0 0.0
        %268 = vmatprep.mubr.f32.mxu0 0.0
        %269 = vmatmul.mubr.f32.gmra.mrb[0].mxu0 %v202
        %v270 = vpop.f32.mrb[0].mxu0
        %v271 = vadd.f32 0.0, %v270
        %v272 = vpop.f32.mrb[0].mxu0
        %273 = vdwg.mxu0
        %274 = vst [vmem:[%s194] sm:$0xff] %v271
        %s275 = sand.u32 %s94, 1
        %s276 = scalar_lea.sflag [#allocation4], %s275
        %s277 = sand.u32 %s94, 1
        %s278 = smul.addr %s277, 8
        %s279 = scalar_lea.vmem [#allocation7], %s278
        // Predicated region
        $region37: #{tpu_custom_call.1} parent=27 // pred_check
          %p280 = pneg %p104
        $region38: #{tpu_custom_call.1} parent=27 // pred_check_branch
          %282 = sbr.rel (%p280) target = $region40
        $region39: #{tpu_custom_call.1} parent=27 // pred_region
          %s284 = ssub.s32 128, 128
          %285 = vsyncadd %s276, %s284
          %s286 = sadd.s32 %s25, %s24
          %s287 = smul.addr %s286, 128
          %s288 = scalar_lea.hbm %s2, %s287
          %s290 = sshll.u32 %s279, 4
          %s291 = int_to_ptr.vmem [resolvable:$true] %s290
          %293 = dma.vmem_to_hbm [thread:$0]  %s291, 128, %s288, %s276
        $region40: #{tpu_custom_call.1} parent=27 // pred_fallthru
          _
      $region28: #{tpu_custom_call.1} parent=5 // pred_fallthru
        _
      %p294 = scmp.le.s32.totalorder 2, %s15
      // Predicated region
      $region41: #{tpu_custom_call.1} parent=5 // pred_check
        %p295 = pneg %p294
      $region42: #{tpu_custom_call.1} parent=5 // pred_check_branch
        %297 = sbr.rel (%p295) target = $region44
      $region43: #{tpu_custom_call.1} parent=5 // pred_region
        %s298 = ssub.s32 %s15, 2
        // Predicated region
        $region45: #{tpu_custom_call.1} parent=43 // pred_check
          %p299 = pneg %p110
        $region46: #{tpu_custom_call.1} parent=43 // pred_check_branch
          %301 = sbr.rel (%p299) target = $region48
        $region47: #{tpu_custom_call.1} parent=43 // pred_region
          %s302 = sand.u32 %s95, 1
          %s303 = scalar_lea.sflag [#allocation4], %s302
          %s304 = sand.u32 %s95, 1
          %s305 = smul.addr %s304, 8
          %s306 = scalar_lea.vmem [#allocation7], %s305
          %307 = dma.done %s303, 128
        $region48: #{tpu_custom_call.1} parent=43 // pred_fallthru
          _
      $region44: #{tpu_custom_call.1} parent=5 // pred_fallthru
        _
    $region6: #{tpu_custom_call.1} parent=1 // loop_footer
      %s19 = sadd.s32 1, %s15
    $region7: #{tpu_custom_call.1} parent=1 // loop_footer_branch
      %14 = sbr.rel target = $region3
    $region8: #{tpu_custom_call.1} parent=1 // loop_exit
      _
    %308 = vsyncpa [#allocation3], 1
    %s309 = scalar_lea.sflag [#allocation3], 1
    %310 = vsyncpa %s309, 1
    %311 = vsyncpa [#allocation6], 1
    %312 = vsyncpa [#allocation4], 1
    %s313 = scalar_lea.sflag [#allocation4], 1
    %314 = vsyncpa %s313, 1

</llo_original>
